<compile_context>
chip_gen: v6e
topology: v6e:2x2x1
jax: 0.10.0
libtpu: 0.0.40
codegen_flags: <defaults>
</compile_context>

<pallas_src>
import functools

import jax
import jax.numpy as jnp
from jax.experimental import pallas as pl
from jax.experimental.pallas import tpu as pltpu


_VMEM_LIMIT_BYTES = 32 * 1024 * 1024


def _round_up(v, m):
    return ((v + m - 1) // m) * m


def _target_tile_bytes():
    """Padded input bytes per grid step; generation-aware (bigger on v7x)."""
    try:
        info = pltpu.get_tpu_info()
        ver = str(getattr(info, "chip_version", ""))
        if "7" in ver:            # v7x-class: ~3.2 TB/s HBM per core
            return 8 * 1024 * 1024
    except Exception:
        pass
    return 4 * 1024 * 1024        # v5e/v6e: already ~85%+ of HBM roofline here


def _snap_rows(n, total, align):
    """Snap a row-block size to a legal value: full extent or an `align` multiple."""
    if n >= total:
        return int(total)
    n = (n // align) * align
    if n < align:
        # One row/batch exceeds the budget: smallest legal block (or full extent).
        return int(min(align, total))
    return int(n)


def _compiler_params(num_axes):
    return pltpu.CompilerParams(
        dimension_semantics=("parallel",) * num_axes,
        vmem_limit_bytes=_VMEM_LIMIT_BYTES,
    )


def _rowdot_kernel(cand_ref, user_ref, out_ref, *, acc_dtype):
    # cand_ref / user_ref: (TR, X) row tiles; out_ref: (1, TR) lane-dense.
    c = cand_ref[...].astype(acc_dtype)
    u = user_ref[...].astype(acc_dtype)
    # VPU multiply + vreg adds across lane chunks, one lane-reduce per row (XLU),
    # hidden under the HBM-bound DMA stream.
    s = jnp.sum(c * u, axis=-1)
    out_ref[...] = s[None, :].astype(out_ref.dtype)


def _bmm_kernel(cand_ref, user_ref, out_ref, *, acc_dtype):
    # cand_ref: (TB, TC, X); user_ref: (TB, X); out_ref: (TB, TC).
    c = cand_ref[...].astype(acc_dtype)
    u = user_ref[...].astype(acc_dtype)
    # Broadcast along the sublane (candidate) axis; lane reduce over X.
    out_ref[...] = jnp.sum(c * u[:, None, :], axis=-1).astype(out_ref.dtype)


def dot_product(candidate_news_vector, user_vector):
    """Pallas implementation of DotProduct.forward.

    candidate_news_vector: (B, C, X)
    user_vector:           (B, X) or (B, C, X)
    returns:               (B, C)
    """
    B, C, X = candidate_news_vector.shape
    out_dtype = jnp.result_type(candidate_news_vector.dtype, user_vector.dtype)
    acc_dtype = jnp.float32 if jnp.issubdtype(out_dtype, jnp.floating) else out_dtype

    citem = jnp.dtype(candidate_news_vector.dtype).itemsize
    uitem = jnp.dtype(user_vector.dtype).itemsize
    x_pad = _round_up(X, 128)      # lane padding of the VMEM tile
    target = _target_tile_bytes()

    if user_vector.ndim == 3:
        # Elementwise * and sum branch: flatten to independent (N, X) rows so
        # the grid has many pipelined steps even for tiny B.
        N = B * C
        cand2 = candidate_news_vector.reshape(N, X)
        user2 = user_vector.reshape(N, X)
        row_bytes = x_pad * (citem + uitem)      # padded VMEM bytes per row, both streams
        tr = _snap_rows(max(1, target // row_bytes), N, 128)
        # TODO(synk): for extremely large X (128 * row_bytes >> VMEM) also tile X
        # and accumulate; typical hidden sizes never hit this.

        out = pl.pallas_call(
            functools.partial(_rowdot_kernel, acc_dtype=acc_dtype),
            out_shape=jax.ShapeDtypeStruct((1, N), out_dtype),
            grid=(pl.cdiv(N, tr),),
            in_specs=[
                pl.BlockSpec((tr, X), lambda i: (i, 0)),
                pl.BlockSpec((tr, X), lambda i: (i, 0)),
            ],
            # Lane-dense output block: unmasked stores, tiny output VMEM.
            out_specs=pl.BlockSpec((1, tr), lambda i: (0, i)),
            compiler_params=_compiler_params(1),
        )(cand2, user2)
        return out.reshape(B, C)

    # torch.bmm branch: grid over (batch blocks, candidate blocks).
    tb_min = B if B < 8 else 8
    # Candidate-axis tile: bound the per-step footprint even for huge C*X.
    tc_budget = max(1, target // max(1, tb_min * x_pad * citem))
    if tc_budget >= C or C < 128:
        tc = C                                   # full extent (always legal)
    else:
        tc = max(128, (tc_budget // 128) * 128)  # 128-mult for lane-dense output
    per_batch = _round_up(tc, 8) * x_pad * citem + x_pad * uitem
    tb = _snap_rows(max(1, target // per_batch), B, 8)

    return pl.pallas_call(
        functools.partial(_bmm_kernel, acc_dtype=acc_dtype),
        out_shape=jax.ShapeDtypeStruct((B, C), out_dtype),
        grid=(pl.cdiv(B, tb), pl.cdiv(C, tc)),
        in_specs=[
            pl.BlockSpec((tb, tc, X), lambda i, j: (i, j, 0)),
            # Same block index across the candidate axis -> stays VMEM-resident,
            # not re-DMA'd per candidate tile.
            pl.BlockSpec((tb, X), lambda i, j: (i, 0)),
        ],
        out_specs=pl.BlockSpec((tb, tc), lambda i, j: (i, j)),
        compiler_params=_compiler_params(2),
    )(candidate_news_vector, user_vector)


def _ref_dot(cand, user):
    if user.ndim == 3:
        return jnp.sum(user * cand, axis=-1)
    return jnp.einsum("bcx,bx->bc", cand, user)


if __name__ == "__main__":
    key = jax.random.PRNGKey(0)

    def check(B, C, X, three_d):
        kk = jax.random.fold_in(key, B * 100003 + C * 131 + X + int(three_d))
        kc, ku = jax.random.split(kk)
        cand = jax.random.normal(kc, (B, C, X), dtype=jnp.float32)
        ushape = (B, C, X) if three_d else (B, X)
        user = jax.random.normal(ku, ushape, dtype=jnp.float32)

        out = dot_product(cand, user)
        jax.block_until_ready(out)

        ref = _ref_dot(cand, user)
        assert out.shape == (B, C), (out.shape, (B, C))
        err = float(jnp.max(jnp.abs(out - ref)))
        assert jnp.allclose(out, ref, atol=1e-4, rtol=1e-5), err

    # Small canonical shapes (both branches: bmm path and elementwise path).
    check(2, 8, 32, three_d=False)
    check(2, 8, 32, three_d=True)
    # 3-D branch with multiple 128-aligned row blocks + a partial final block
    # (exercises the lane-dense output path with masked boundary writeback).
    check(3, 1500, 40, three_d=True)
    # Slightly larger bmm-branch shape (B a multiple of 8).
    check(16, 24, 96, three_d=False)

    print("KERNEL_OK")
</pallas_src>

<mosaic_0001>
module attributes {stable_mosaic.version = 11 : i64} {
  func.func @_bmm_kernel(%arg0: i32, %arg1: i32, %arg2: memref<2x8x32xf32, #tpu.memory_space<vmem>>, %arg3: memref<2x32xf32, #tpu.memory_space<vmem>>, %arg4: memref<2x8xf32, #tpu.memory_space<vmem>>) attributes {dimension_semantics = [#tpu.dimension_semantics<parallel>, #tpu.dimension_semantics<parallel>], iteration_bounds = array<i64: 1, 1>, scalar_prefetch = 0 : i64, scratch_operands = 0 : i64, tpu.core_type = #tpu.core_type<tc>, window_params = [{transform_indices = @transform_0, window_bounds = array<i64: 2, 8, 32>}, {transform_indices = @transform_1, window_bounds = array<i64: 2, 32>}, {transform_indices = @transform_2, window_bounds = array<i64: 2, 8>}]} {
    %c0 = arith.constant 0 : index
    %c0_0 = arith.constant 0 : index
    %c0_1 = arith.constant 0 : index
    %0 = vector.load %arg2[%c0, %c0_0, %c0_1] : memref<2x8x32xf32, #tpu.memory_space<vmem>>, vector<2x8x32xf32>
    %c0_2 = arith.constant 0 : index
    %c0_3 = arith.constant 0 : index
    %1 = vector.load %arg3[%c0_2, %c0_3] : memref<2x32xf32, #tpu.memory_space<vmem>>, vector<2x32xf32>
    %2 = vector.shape_cast %1 : vector<2x32xf32> to vector<2x1x32xf32>
    %3 = vector.broadcast %2 : vector<2x1x32xf32> to vector<2x8x32xf32>
    %4 = arith.mulf %0, %3 : vector<2x8x32xf32>
    %cst = arith.constant dense<0.000000e+00> : vector<2x8xf32>
    %5 = vector.multi_reduction <add>, %4, %cst [2] : vector<2x8x32xf32> to vector<2x8xf32>
    %c0_4 = arith.constant 0 : index
    %c0_5 = arith.constant 0 : index
    %6 = vector.load %arg4[%c0_4, %c0_5] : memref<2x8xf32, #tpu.memory_space<vmem>>, vector<2x8xf32>
    tpu.vector_store %arg4[%c0_4, %c0_5], %5 {strides = array<i32>} : memref<2x8xf32, #tpu.memory_space<vmem>>, vector<2x8xf32>,
    return
  }
  func.func @transform_0(%arg0: i32, %arg1: i32) -> (i32, i32, i32) {
    %c0_i32 = arith.constant 0 : i32
    %c0_i32_0 = arith.constant 0 : i32
    return %arg0, %arg1, %c0_i32 : i32, i32, i32
  }
  func.func @transform_1(%arg0: i32, %arg1: i32) -> (i32, i32) {
    %c0_i32 = arith.constant 0 : i32
    %c0_i32_0 = arith.constant 0 : i32
    return %arg0, %c0_i32 : i32, i32
  }
  func.func @transform_2(%arg0: i32, %arg1: i32) -> (i32, i32) {
    %c0_i32 = arith.constant 0 : i32
    return %arg0, %arg1 : i32, i32
  }
}

</mosaic_0001>

<llo_original>
// kernel: tpu_custom_call.1
$region0: #{tpu_custom_call.1}
  #allocation0 [shape = 'u32[]', space=smem, size = 0x4, offset = 0x4, fixed_abs, tag = 'smem constant byte address 0x4 - core index']
  #allocation1 [shape = 'u32[144,128]{1,0:T(1,128)}', space=vmem, size = 0x12000, scoped, tag = 'internal scratch']
  %s0 = inlined_call_operand.hbm [shape: f32[2,8,32], index: 0, kind: input, shape index: {}]
  %s1 = inlined_call_operand.hbm [shape: f32[2,32], index: 1, kind: input, shape index: {}]
  %s2 = inlined_call_operand.hbm [shape: f32[2,8], index: 2, kind: output, shape index: {}]
  %s3 = sld [smem:[#allocation0]]
  $region26: #{tpu_custom_call.1} parent=0
    _
  %s5 = ssub.s32 1, %s3
  %s6 = scalar_select 0, %s5, %s3
  $region1: #{tpu_custom_call.1} parent=0
    #allocation2 [shape = 'u8[8192]{0}', space=vmem, size = 0x2000, scoped, tag = 'input window, operand 0, single buffered']
    #allocation3 [shape = 's32[1]{0}', space=sflag, size = 0x4, scoped, tag = 'scoped memory for tpu_custom_call.1']
    #allocation4 [shape = 's32[1]{0}', space=sflag, size = 0x4, scoped, tag = 'scoped memory for tpu_custom_call.1']
    #allocation5 [shape = 'u8[1024]{0}', space=vmem, size = 0x400, scoped, tag = 'input window, operand 1, single buffered']
    #allocation6 [shape = 's32[1]{0}', space=sflag, size = 0x4, scoped, tag = 'scoped memory for tpu_custom_call.1']
    #allocation7 [shape = 'u8[1024]{0}', space=vmem, size = 0x400, scoped, tag = 'output window, operand 0, single buffered']
    %7 = vsyncpa [#allocation3], 0
    %8 = vsyncpa [#allocation6], 0
    %9 = vsyncpa [#allocation4], 0
    // Predicated region
    $region2: #{tpu_custom_call.1} parent=1 // pred_check
      _
    $region3: #{tpu_custom_call.1} parent=1 // pred_check_branch
      %11 = sbr.rel (0) target = $region5
    $region4: #{tpu_custom_call.1} parent=1 // pred_region
      %s13 = ssub.s32 256, 256
      %14 = vsyncadd [#allocation3], %s13
      %s15 = sshll.u32 [#allocation2], 4
      %s16 = int_to_ptr.vmem [resolvable:$true] %s15
      %21 = dma.hbm_to_vmem [thread:$0]  %s0, 256, %s16, [#allocation3], 128, 128, 8
    $region5: #{tpu_custom_call.1} parent=1 // pred_fallthru
      _
    // Predicated region
    $region6: #{tpu_custom_call.1} parent=1 // pred_check
      _
    $region7: #{tpu_custom_call.1} parent=1 // pred_check_branch
      %23 = sbr.rel (0) target = $region9
    $region8: #{tpu_custom_call.1} parent=1 // pred_region
      %s25 = ssub.s32 32, 32
      %26 = vsyncadd [#allocation6], %s25
      %s28 = sshll.u32 [#allocation5], 4
      %s29 = int_to_ptr.vmem [resolvable:$true] %s28
      %31 = dma.hbm_to_vmem [thread:$0]  %s1, 32, %s29, [#allocation6]
    $region9: #{tpu_custom_call.1} parent=1 // pred_fallthru
      _
    // Predicated region
    $region10: #{tpu_custom_call.1} parent=1 // pred_check
      _
    $region11: #{tpu_custom_call.1} parent=1 // pred_check_branch
      %33 = sbr.rel (0) target = $region13
    $region12: #{tpu_custom_call.1} parent=1 // pred_region
      %34 = dma.done [#allocation3], 256
    $region13: #{tpu_custom_call.1} parent=1 // pred_fallthru
      _
    // Predicated region
    $region14: #{tpu_custom_call.1} parent=1 // pred_check
      _
    $region15: #{tpu_custom_call.1} parent=1 // pred_check_branch
      %36 = sbr.rel (0) target = $region17
    $region16: #{tpu_custom_call.1} parent=1 // pred_region
      %37 = dma.done [#allocation6], 32
    $region17: #{tpu_custom_call.1} parent=1 // pred_fallthru
      _
    %v38 = vld [vmem:[#allocation2] sm:$0xff]
    %v39 = vld [vmem:[#allocation2 + $0x8] sm:$0xff]
    %v40 = vld [vmem:[#allocation5] sm:$0x3]
    %v43 = vunpack.c.l.s4 1966171168
    %v44 = vunpack.c.0.s8 %v43
    %v45 = vlaneseq
    %v46 = vshrl.u32 %v45, 7
    %v47 = vsub.s32 %v44, %v46
    %v48 = vrot.slane %v40, %v47
    %v49 = vcombine.high %v48, %v48
    %v51 = vunpack.c.l.s4 1966171168
    %v52 = vunpack.c.0.s8 %v51
    %v53 = vlaneseq
    %v54 = vshrl.u32 %v53, 7
    %v55 = vsub.s32 %v52, %v54
    %v56 = vrot.slane %v48, %v55
    %v58 = vunpack.c.l.s4 1966171168
    %v59 = vunpack.c.0.s8 %v58
    %v60 = vlaneseq
    %v61 = vshrl.u32 %v60, 7
    %v62 = vsub.s32 %v59, %v61
    %v63 = vrot.slane %v49, %v62
    %v64 = vlaneseq
    %v65 = vshrl.u32 %v64, 7
    %v66 = vsub.s32 0, %v65
    %v67 = vrot.slane %v56, %v66
    %v68 = vlaneseq
    %v69 = vshrl.u32 %v68, 7
    %v70 = vsub.s32 0, %v69
    %v71 = vrot.slane %v63, %v70
    %v74 = vmul.f32 %v38, %v67
    %v75 = vmul.f32 %v39, %v71
    %vm76 = vcmask 261120
    %v77 = vsel %vm76, %v74, 0.0
    %78 = vadd.xlane.f32.xlu0 %v77
    %v79 = vpop.xlane.xlu0 %78
    %v80 = vsel %vm76, %v75, 0.0
    %81 = vadd.xlane.f32.xlu0 %v80
    %v82 = vpop.xlane.xlu0 %81
    %v85 = vlaneseq
    %v86 = vand.u32 %v85, 127
    %v87 = vlaneseq
    %v88 = vshrl.u32 %v87, 7
    %v89 = vsub.s32 %v86, %v88
    %v90 = vrot.slane %v79, %v89
    %v91 = vlaneseq
    %v92 = vshrl.u32 %v91, 7
    %v93 = vsub.s32 %v86, %v92
    %v94 = vrot.slane %v82, %v93
    %vm95 = vcmask 1041409
    %v96 = vsel %vm95, %v94, %v90
    %vm98 = vcmask 58368
    %99 = vst.msk [vmem:[#allocation7] sm:$0x3] %vm98, %v96
    // Predicated region
    $region18: #{tpu_custom_call.1} parent=1 // pred_check
      _
    $region19: #{tpu_custom_call.1} parent=1 // pred_check_branch
      %101 = sbr.rel (0) target = $region21
    $region20: #{tpu_custom_call.1} parent=1 // pred_region
      %s103 = ssub.s32 32, 32
      %104 = vsyncadd [#allocation4], %s103
      %s106 = sshll.u32 [#allocation7], 4
      %s107 = int_to_ptr.vmem [resolvable:$true] %s106
      %109 = dma.vmem_to_hbm [thread:$0]  %s107, 32, %s2, [#allocation4]
    $region21: #{tpu_custom_call.1} parent=1 // pred_fallthru
      _
    // Predicated region
    $region22: #{tpu_custom_call.1} parent=1 // pred_check
      _
    $region23: #{tpu_custom_call.1} parent=1 // pred_check_branch
      %111 = sbr.rel (0) target = $region25
    $region24: #{tpu_custom_call.1} parent=1 // pred_region
      %112 = dma.done [#allocation4], 32
    $region25: #{tpu_custom_call.1} parent=1 // pred_fallthru
      _
    %113 = vsyncpa [#allocation3], 1
    %114 = vsyncpa [#allocation6], 1
    %115 = vsyncpa [#allocation4], 1

</llo_original>
